<compile_context>
chip_gen: v5e
topology: v5e:2x2
jax: 0.10.0
libtpu: 0.0.40
codegen_flags: <defaults>
</compile_context>

<pallas_src>
import functools

import jax
import jax.numpy as jnp
from jax import lax
from jax.experimental import pallas as pl
from jax.experimental.pallas import tpu as pltpu


def _round_up(x, m):
    return (x + m - 1) // m * m


def _cdiv(a, b):
    return -(-a // b)


# ---------------------------------------------------------------------------
# Kernel
# ---------------------------------------------------------------------------
def bicep_kernel(*refs, tile_s, ch, multi_t, use_edge):
    if use_edge:
        (m_ref, x_ref, z_ref, w_in_ref, b_in_ref, expand_ref, edge_ref,
         w_out_ref, b_out_ref, out_ref, acc_ref) = refs
    else:
        (m_ref, x_ref, z_ref, w_in_ref, b_in_ref, expand_ref,
         w_out_ref, b_out_ref, out_ref, acc_ref) = refs
        edge_ref = None

    tile_b = acc_ref.shape[1]
    lanes = acc_ref.shape[2]
    num_chunks = tile_b // ch
    lane_blk = min(lanes, 512)          # bounds vreg pressure per chunk
    n_lane_blk = lanes // lane_blk

    if multi_t:
        k = pl.program_id(1)
        base = k * tile_s

        @pl.when(k == 0)
        def _():
            acc_ref[...] = jnp.zeros_like(acc_ref)

    # ---- time contraction, register-blocked over (16-row, <=512-lane) chunks
    # S_j[b, p] = sum_s M[j, s] * z[s, b, p]; M (SMEM) folds conv weights,
    # the (1 - decay*dt)^k decay matrix and sqrt(dt).
    def contract_chunk(row):
        rows = pl.ds(row, ch)
        for lb in range(n_lane_blk):
            cols = pl.ds(lb * lane_blk, lane_blk)
            if multi_t:
                a0 = acc_ref[0, rows, cols]
                a1 = acc_ref[1, rows, cols]
                a2 = acc_ref[2, rows, cols]
                start = 0
            else:
                zc = z_ref[0, rows, cols].astype(jnp.float32)
                a0 = m_ref[0, 0] * zc
                a1 = m_ref[1, 0] * zc
                a2 = m_ref[2, 0] * zc
                start = 1
            for s in range(start, tile_s):
                zc = z_ref[s, rows, cols].astype(jnp.float32)
                t = base + s if multi_t else s
                a0 = a0 + m_ref[0, t] * zc
                a1 = a1 + m_ref[1, t] * zc
                a2 = a2 + m_ref[2, t] * zc
            acc_ref[0, rows, cols] = a0
            acc_ref[1, rows, cols] = a1
            acc_ref[2, rows, cols] = a2

    if num_chunks == 1:
        contract_chunk(0)
    else:
        def body(c, carry):
            contract_chunk(pl.multiple_of(c * ch, ch))
            return carry
        lax.fori_loop(0, num_chunks, body, 0)

    # ---- epilogue: feedback, 3-tap conv along the path (lane) axis, output --
    def tail():
        # input projection only over the group columns actually consumed
        proj = jnp.dot(x_ref[...], w_in_ref[...],
                       preferred_element_type=jnp.float32) + b_in_ref[...]
        sig = jax.nn.sigmoid(proj).astype(jnp.bfloat16)            # [TB, Gp]
        # per-path feedback via one-hot group expand (pad rows are zero)
        fb = jnp.dot(sig, expand_ref[...],
                     preferred_element_type=jnp.float32)            # [TB, P]

        t0 = fb * acc_ref[0]
        t1 = fb * acc_ref[1]
        t2 = fb * acc_ref[2]
        left = pltpu.roll(t0, shift=1, axis=1)                      # t0[p-1]
        right = pltpu.roll(t2, shift=lanes - 1, axis=1)             # t2[p+1]
        if use_edge:
            # only needed when n_paths == P; otherwise fb==0 pad lanes absorb
            # the roll wrap-around and w_out pad rows are zero anyway.
            left = left * edge_ref[0:1, :]
            right = right * edge_ref[1:2, :]
        agg = (left + t1 + right).astype(jnp.bfloat16)

        out_ref[...] = jnp.dot(agg, w_out_ref[...],
                               preferred_element_type=jnp.float32) + b_out_ref[...]

    if multi_t:
        @pl.when(pl.program_id(1) == pl.num_programs(1) - 1)
        def _():
            tail()
    else:
        tail()


# ---------------------------------------------------------------------------
# Tile / VMEM planning
# ---------------------------------------------------------------------------
def _plan(batch, input_size, output_size, n_paths, n_steps, n_groups=10):
    n_groups = min(n_groups, n_paths)
    group_size = max(n_paths // n_groups, 1)

    P = _round_up(n_paths, 128)
    OUT = _round_up(output_size, 128)
    G_pad = _round_up(n_groups, 128)
    use_edge = (n_paths == P)
    CH = 16                                 # bf16-sublane-aligned row chunks

    try:
        phys = pltpu.get_tpu_info().vmem_capacity_bytes
    except Exception:
        phys = 64 << 20                     # conservative fallback (v7x per-TC)
    cap = min(phys * 3 // 4, 96 << 20)      # v7x ~48 MiB, v5e/v6e ~96 MiB
    budget = cap - (4 << 20)

    def pick_ts(max_ts):
        nt = _cdiv(n_steps, max_ts)
        return _cdiv(n_steps, nt)

    def vmem_need(tb, ts):
        z_blk = 2 * ts * tb * P * 2                         # bf16 noise, 2 bufs
        x_blk = 2 * tb * input_size * 4
        o_blk = 2 * tb * OUT * 4
        wts = 2 * (input_size * G_pad * 4 + G_pad * 4 + G_pad * P * 2
                   + P * OUT * 2 + OUT * 4 + (2 * P * 4 if use_edge else 0))
        acc = 3 * tb * P * 4                                # scratch accumulators
        temps = 8 * tb * P * 4 + 2 * tb * G_pad * 4         # fb/t*/agg + proj/sig
        return z_blk + x_blk + o_blk + wts + acc + temps

    B_pad = _round_up(batch, 16)
    TILE_B = min(256, B_pad)
    if B_pad >= 32:                          # >=2 batch tiles -> both v7x TCs busy
        TILE_B = min(TILE_B, _round_up(B_pad // 2, 16))

    max_ts = min(n_steps, 64)                # bounds the unrolled time loop
    TILE_S = pick_ts(max_ts)
    while vmem_need(TILE_B, TILE_S) > budget:
        if TILE_S > 8:                       # shrink time first (keeps MXU M dense)
            max_ts = max(8, max_ts // 2)
            TILE_S = pick_ts(max_ts)
        elif TILE_B > 16:
            TILE_B = max(16, _round_up(TILE_B // 2, 16))
        elif TILE_S > 1:
            max_ts = max(1, max_ts // 2)
            TILE_S = pick_ts(max_ts)
        else:
            break  # TODO(synk): huge P*OUT weights would need output-dim tiling

    B_pad = _round_up(B_pad, TILE_B)
    S_pad = TILE_S * _cdiv(n_steps, TILE_S)
    num_t = S_pad // TILE_S
    vmem_limit = int(min(cap, max(32 << 20, vmem_need(TILE_B, TILE_S) + (8 << 20))))

    return dict(n_groups=n_groups, group_size=group_size, P=P, OUT=OUT,
                G_pad=G_pad, use_edge=use_edge, CH=CH, TILE_B=TILE_B,
                TILE_S=TILE_S, B_pad=B_pad, S_pad=S_pad, num_t=num_t,
                vmem_limit=vmem_limit)


def bicep_noise_shape(batch, input_size, output_size, n_paths, n_steps,
                      n_groups=10):
    """Kernel-native Brownian-noise layout: time-major, padded, bf16."""
    p = _plan(batch, input_size, output_size, n_paths, n_steps, n_groups)
    return (p["S_pad"], p["B_pad"], p["P"]), jnp.bfloat16


# ---------------------------------------------------------------------------
# Forward wrapper
# ---------------------------------------------------------------------------
def bicep_forward(x, noise, params, *, n_paths, n_steps, T=1.0, n_groups=10):
    batch, input_size = x.shape
    output_size = params["w_out"].shape[1]
    plan = _plan(batch, input_size, output_size, n_paths, n_steps, n_groups)
    n_groups = plan["n_groups"]
    group_size = plan["group_size"]
    P, OUT, G_pad = plan["P"], plan["OUT"], plan["G_pad"]
    use_edge, CH = plan["use_edge"], plan["CH"]
    TILE_B, TILE_S = plan["TILE_B"], plan["TILE_S"]
    B_pad, S_pad, num_t = plan["B_pad"], plan["S_pad"], plan["num_t"]

    dt = T / n_steps
    sqrt_dt = float(dt) ** 0.5

    # ---- constants hoisted out of the kernel --------------------------------
    decay = jnp.asarray(params["decay"], jnp.float32).reshape(())
    base = 1.0 - decay * dt
    # powers[e] = base**e via cumprod (safe even if decay*dt >= 1)
    powers = jnp.concatenate([
        jnp.ones((1,), jnp.float32),
        jnp.cumprod(jnp.full((max(n_steps - 1, 0),), base, dtype=jnp.float32)),
    ])
    expo = jnp.arange(n_steps + 1)[:, None] - 1 - jnp.arange(n_steps)[None, :]
    L = jnp.where(expo >= 0, powers[jnp.clip(expo, 0, n_steps - 1)], 0.0)
    # fused conv-weights x decay-matrix x sqrt(dt): [3, n_steps], padded to S_pad
    M = sqrt_dt * (params["w_conv"].T.astype(jnp.float32) @ L)
    M = jnp.zeros((3, S_pad), jnp.float32).at[:, :n_steps].set(M)

    p_idx = jnp.arange(P)
    g_idx = jnp.arange(G_pad)
    expand = (((p_idx[None, :] // group_size) == g_idx[:, None])
              & (p_idx[None, :] < n_paths)
              & (g_idx[:, None] < n_groups)).astype(jnp.bfloat16)      # [Gp, P]

    # input projection: only the group columns feed the sigmoid / feedback
    w_in = jnp.zeros((input_size, G_pad), jnp.float32).at[:, :n_groups].set(
        params["w_in"][:, :n_groups])
    b_in = jnp.zeros((1, G_pad), jnp.float32).at[0, :n_groups].set(
        params["b_in"][:n_groups])
    # bf16 weights for the large MXU matmul (f32 accumulate)
    w_out = jnp.zeros((P, OUT), jnp.bfloat16).at[:n_paths, :output_size].set(
        params["w_out"].astype(jnp.bfloat16))
    b_out_eff = params["b_out"] + params["b_conv"] * jnp.sum(params["w_out"], axis=0)
    b_out = jnp.zeros((1, OUT), jnp.float32).at[0, :output_size].set(b_out_eff)

    x_p = jnp.zeros((B_pad, input_size), jnp.float32).at[:batch].set(x)

    # ---- noise: zero-copy if already in kernel-native layout ----------------
    native = (S_pad, B_pad, P)
    if noise.shape == native and noise.dtype == jnp.bfloat16:
        z = noise
    elif (noise.ndim == 3 and noise.shape[0] >= n_steps
          and noise.shape[1] >= batch and noise.shape[2] >= n_paths):
        # time-major logical layout: single fused pad+cast, no transpose
        z = jnp.zeros(native, jnp.bfloat16).at[:n_steps, :batch, :n_paths].set(
            noise[:n_steps, :batch, :n_paths].astype(jnp.bfloat16))
    elif noise.shape == (batch, n_steps, n_paths):
        # batch-major fallback (slow path: extra transpose)
        z = jnp.zeros(native, jnp.bfloat16).at[:n_steps, :batch, :n_paths].set(
            jnp.transpose(noise, (1, 0, 2)).astype(jnp.bfloat16))
    else:
        raise ValueError(f"unexpected noise shape {noise.shape}")

    kernel = functools.partial(bicep_kernel, tile_s=TILE_S, ch=CH,
                               multi_t=(num_t > 1), use_edge=use_edge)

    def fixed(shape):
        return pl.BlockSpec(shape, lambda b, k: (0,) * len(shape))

    in_specs = [
        pl.BlockSpec(memory_space=pltpu.MemorySpace.SMEM),             # M [3, S_pad]
        pl.BlockSpec((TILE_B, input_size), lambda b, k: (b, 0)),       # x
        pl.BlockSpec((TILE_S, TILE_B, P), lambda b, k: (k, b, 0)),     # noise (bf16)
        fixed((input_size, G_pad)),                                    # w_in (groups)
        fixed((1, G_pad)),                                             # b_in
        fixed((G_pad, P)),                                             # group expand
    ]
    operands = [M, x_p, z, w_in, b_in, expand]
    if use_edge:
        edge = jnp.stack([(p_idx != 0).astype(jnp.float32),
                          (p_idx != n_paths - 1).astype(jnp.float32)])  # [2, P]
        in_specs.append(fixed((2, P)))
        operands.append(edge)
    in_specs += [fixed((P, OUT)), fixed((1, OUT))]                     # w_out, b_out
    operands += [w_out, b_out]

    out = pl.pallas_call(
        kernel,
        out_shape=jax.ShapeDtypeStruct((B_pad, OUT), jnp.float32),
        grid=(B_pad // TILE_B, num_t),
        in_specs=in_specs,
        out_specs=pl.BlockSpec((TILE_B, OUT), lambda b, k: (b, 0)),
        scratch_shapes=[pltpu.VMEM((3, TILE_B, P), jnp.float32)],
        compiler_params=pltpu.CompilerParams(
            dimension_semantics=("parallel", "arbitrary"),
            vmem_limit_bytes=plan["vmem_limit"]),
    )(*operands)

    return out[:batch, :output_size]


# ---------------------------------------------------------------------------
# Parameter init (matches the PyTorch module's shapes) and demo
# ---------------------------------------------------------------------------
def init_params(key, input_size, output_size, n_paths, n_steps):
    ks = jax.random.split(key, 6)

    def uni(k, shape, bound):
        return jax.random.uniform(k, shape, jnp.float32, -bound, bound)

    b_lin_in = 1.0 / (input_size ** 0.5)
    b_lin_out = 1.0 / (n_paths ** 0.5)
    b_conv = 1.0 / (((n_steps + 1) * 3) ** 0.5)
    return dict(
        w_in=uni(ks[0], (input_size, n_paths), b_lin_in),
        b_in=uni(ks[1], (n_paths,), b_lin_in),
        w_out=uni(ks[2], (n_paths, output_size), b_lin_out),
        b_out=uni(ks[3], (output_size,), b_lin_out),
        w_conv=uni(ks[4], (n_steps + 1, 3), b_conv),   # Conv1d(n_steps+1, 1, k=3)
        b_conv=uni(ks[5], (), b_conv),
        decay=jnp.asarray(0.1, jnp.float32),           # decay_rate parameter
    )


if __name__ == "__main__":
    B, input_size, output_size = 2, 16, 8
    n_paths, n_steps, T = 40, 8, 1.0          # n_paths splits into 10 groups of 4

    key = jax.random.PRNGKey(0)
    k_param, k_x, k_noise = jax.random.split(key, 3)

    params = init_params(k_param, input_size, output_size, n_paths, n_steps)
    x = jax.random.normal(k_x, (B, input_size), jnp.float32)

    # Brownian noise generated directly in the kernel-native layout
    # (time-major, padded, bf16): no wrapper-side pad/transpose/cast.
    z_shape, z_dtype = bicep_noise_shape(B, input_size, output_size,
                                         n_paths, n_steps)
    noise = jax.random.normal(k_noise, z_shape, dtype=z_dtype)

    fwd = jax.jit(functools.partial(bicep_forward, n_paths=n_paths,
                                    n_steps=n_steps, T=T))
    out = fwd(x, noise, params)
    out = jax.block_until_ready(out)

    assert out.shape == (B, output_size)
    assert bool(jnp.all(jnp.isfinite(out)))
    print("KERNEL_OK")
</pallas_src>

<mosaic_0001>
module attributes {stable_mosaic.version = 11 : i64} {
  func.func @bicep_kernel(%arg0: i32, %arg1: i32, %arg2: memref<3x8xf32, #tpu.memory_space<smem>>, %arg3: memref<16x16xf32, #tpu.memory_space<vmem>>, %arg4: memref<8x16x128xbf16, #tpu.memory_space<vmem>>, %arg5: memref<16x128xf32, #tpu.memory_space<vmem>>, %arg6: memref<1x128xf32, #tpu.memory_space<vmem>>, %arg7: memref<128x128xbf16, #tpu.memory_space<vmem>>, %arg8: memref<128x128xbf16, #tpu.memory_space<vmem>>, %arg9: memref<1x128xf32, #tpu.memory_space<vmem>>, %arg10: memref<16x128xf32, #tpu.memory_space<vmem>>, %arg11: memref<3x16x128xf32, #tpu.memory_space<vmem>>) attributes {dimension_semantics = [#tpu.dimension_semantics<parallel>, #tpu.dimension_semantics<arbitrary>], iteration_bounds = array<i64: 1, 1>, scalar_prefetch = 0 : i64, scratch_operands = 1 : i64, tpu.core_type = #tpu.core_type<tc>, window_params = [{transform_indices = @transform_0, window_bounds = array<i64: 3, 8>}, {transform_indices = @transform_1, window_bounds = array<i64: 16, 16>}, {transform_indices = @transform_2, window_bounds = array<i64: 8, 16, 128>}, {pipeline_mode = #tpu.pipeline_mode<synchronous>, transform_indices = @transform_3, window_bounds = array<i64: 16, 128>}, {pipeline_mode = #tpu.pipeline_mode<synchronous>, transform_indices = @transform_4, window_bounds = array<i64: 1, 128>}, {pipeline_mode = #tpu.pipeline_mode<synchronous>, transform_indices = @transform_5, window_bounds = array<i64: 128, 128>}, {pipeline_mode = #tpu.pipeline_mode<synchronous>, transform_indices = @transform_6, window_bounds = array<i64: 128, 128>}, {pipeline_mode = #tpu.pipeline_mode<synchronous>, transform_indices = @transform_7, window_bounds = array<i64: 1, 128>}, {transform_indices = @transform_8, window_bounds = array<i64: 16, 128>}]} {
    %c0 = arith.constant 0 : index
    %c0_0 = arith.constant 0 : index
    %c0_1 = arith.constant 0 : index
    %0 = vector.load %arg4[%c0, %c0_0, %c0_1] : memref<8x16x128xbf16, #tpu.memory_space<vmem>>, vector<1x16x128xbf16>
    %1 = vector.shape_cast %0 : vector<1x16x128xbf16> to vector<16x128xbf16>
    %2 = arith.extf %1 : vector<16x128xbf16> to vector<16x128xf32>
    %c0_2 = arith.constant 0 : index
    %c0_3 = arith.constant 0 : index
    %3 = memref.load %arg2[%c0_2, %c0_3] : memref<3x8xf32, #tpu.memory_space<smem>>
    %4 = vector.broadcast %3 : f32 to vector<16x128xf32>
    %5 = arith.mulf %4, %2 : vector<16x128xf32>
    %c1 = arith.constant 1 : index
    %c0_4 = arith.constant 0 : index
    %6 = memref.load %arg2[%c1, %c0_4] : memref<3x8xf32, #tpu.memory_space<smem>>
    %7 = vector.broadcast %6 : f32 to vector<16x128xf32>
    %8 = arith.mulf %7, %2 : vector<16x128xf32>
    %c2 = arith.constant 2 : index
    %c0_5 = arith.constant 0 : index
    %9 = memref.load %arg2[%c2, %c0_5] : memref<3x8xf32, #tpu.memory_space<smem>>
    %10 = vector.broadcast %9 : f32 to vector<16x128xf32>
    %11 = arith.mulf %10, %2 : vector<16x128xf32>
    %c1_6 = arith.constant 1 : index
    %c0_7 = arith.constant 0 : index
    %c0_8 = arith.constant 0 : index
    %12 = vector.load %arg4[%c1_6, %c0_7, %c0_8] : memref<8x16x128xbf16, #tpu.memory_space<vmem>>, vector<1x16x128xbf16>
    %13 = vector.shape_cast %12 : vector<1x16x128xbf16> to vector<16x128xbf16>
    %14 = arith.extf %13 : vector<16x128xbf16> to vector<16x128xf32>
    %c0_9 = arith.constant 0 : index
    %c1_10 = arith.constant 1 : index
    %15 = memref.load %arg2[%c0_9, %c1_10] : memref<3x8xf32, #tpu.memory_space<smem>>
    %16 = vector.broadcast %15 : f32 to vector<16x128xf32>
    %17 = arith.mulf %16, %14 : vector<16x128xf32>
    %18 = arith.addf %5, %17 : vector<16x128xf32>
    %c1_11 = arith.constant 1 : index
    %c1_12 = arith.constant 1 : index
    %19 = memref.load %arg2[%c1_11, %c1_12] : memref<3x8xf32, #tpu.memory_space<smem>>
    %20 = vector.broadcast %19 : f32 to vector<16x128xf32>
    %21 = arith.mulf %20, %14 : vector<16x128xf32>
    %22 = arith.addf %8, %21 : vector<16x128xf32>
    %c2_13 = arith.constant 2 : index
    %c1_14 = arith.constant 1 : index
    %23 = memref.load %arg2[%c2_13, %c1_14] : memref<3x8xf32, #tpu.memory_space<smem>>
    %24 = vector.broadcast %23 : f32 to vector<16x128xf32>
    %25 = arith.mulf %24, %14 : vector<16x128xf32>
    %26 = arith.addf %11, %25 : vector<16x128xf32>
    %c2_15 = arith.constant 2 : index
    %c0_16 = arith.constant 0 : index
    %c0_17 = arith.constant 0 : index
    %27 = vector.load %arg4[%c2_15, %c0_16, %c0_17] : memref<8x16x128xbf16, #tpu.memory_space<vmem>>, vector<1x16x128xbf16>
    %28 = vector.shape_cast %27 : vector<1x16x128xbf16> to vector<16x128xbf16>
    %29 = arith.extf %28 : vector<16x128xbf16> to vector<16x128xf32>
    %c0_18 = arith.constant 0 : index
    %c2_19 = arith.constant 2 : index
    %30 = memref.load %arg2[%c0_18, %c2_19] : memref<3x8xf32, #tpu.memory_space<smem>>
    %31 = vector.broadcast %30 : f32 to vector<16x128xf32>
    %32 = arith.mulf %31, %29 : vector<16x128xf32>
    %33 = arith.addf %18, %32 : vector<16x128xf32>
    %c1_20 = arith.constant 1 : index
    %c2_21 = arith.constant 2 : index
    %34 = memref.load %arg2[%c1_20, %c2_21] : memref<3x8xf32, #tpu.memory_space<smem>>
    %35 = vector.broadcast %34 : f32 to vector<16x128xf32>
    %36 = arith.mulf %35, %29 : vector<16x128xf32>
    %37 = arith.addf %22, %36 : vector<16x128xf32>
    %c2_22 = arith.constant 2 : index
    %c2_23 = arith.constant 2 : index
    %38 = memref.load %arg2[%c2_22, %c2_23] : memref<3x8xf32, #tpu.memory_space<smem>>
    %39 = vector.broadcast %38 : f32 to vector<16x128xf32>
    %40 = arith.mulf %39, %29 : vector<16x128xf32>
    %41 = arith.addf %26, %40 : vector<16x128xf32>
    %c3 = arith.constant 3 : index
    %c0_24 = arith.constant 0 : index
    %c0_25 = arith.constant 0 : index
    %42 = vector.load %arg4[%c3, %c0_24, %c0_25] : memref<8x16x128xbf16, #tpu.memory_space<vmem>>, vector<1x16x128xbf16>
    %43 = vector.shape_cast %42 : vector<1x16x128xbf16> to vector<16x128xbf16>
    %44 = arith.extf %43 : vector<16x128xbf16> to vector<16x128xf32>
    %c0_26 = arith.constant 0 : index
    %c3_27 = arith.constant 3 : index
    %45 = memref.load %arg2[%c0_26, %c3_27] : memref<3x8xf32, #tpu.memory_space<smem>>
    %46 = vector.broadcast %45 : f32 to vector<16x128xf32>
    %47 = arith.mulf %46, %44 : vector<16x128xf32>
    %48 = arith.addf %33, %47 : vector<16x128xf32>
    %c1_28 = arith.constant 1 : index
    %c3_29 = arith.constant 3 : index
    %49 = memref.load %arg2[%c1_28, %c3_29] : memref<3x8xf32, #tpu.memory_space<smem>>
    %50 = vector.broadcast %49 : f32 to vector<16x128xf32>
    %51 = arith.mulf %50, %44 : vector<16x128xf32>
    %52 = arith.addf %37, %51 : vector<16x128xf32>
    %c2_30 = arith.constant 2 : index
    %c3_31 = arith.constant 3 : index
    %53 = memref.load %arg2[%c2_30, %c3_31] : memref<3x8xf32, #tpu.memory_space<smem>>
    %54 = vector.broadcast %53 : f32 to vector<16x128xf32>
    %55 = arith.mulf %54, %44 : vector<16x128xf32>
    %56 = arith.addf %41, %55 : vector<16x128xf32>
    %c4 = arith.constant 4 : index
    %c0_32 = arith.constant 0 : index
    %c0_33 = arith.constant 0 : index
    %57 = vector.load %arg4[%c4, %c0_32, %c0_33] : memref<8x16x128xbf16, #tpu.memory_space<vmem>>, vector<1x16x128xbf16>
    %58 = vector.shape_cast %57 : vector<1x16x128xbf16> to vector<16x128xbf16>
    %59 = arith.extf %58 : vector<16x128xbf16> to vector<16x128xf32>
    %c0_34 = arith.constant 0 : index
    %c4_35 = arith.constant 4 : index
    %60 = memref.load %arg2[%c0_34, %c4_35] : memref<3x8xf32, #tpu.memory_space<smem>>
    %61 = vector.broadcast %60 : f32 to vector<16x128xf32>
    %62 = arith.mulf %61, %59 : vector<16x128xf32>
    %63 = arith.addf %48, %62 : vector<16x128xf32>
    %c1_36 = arith.constant 1 : index
    %c4_37 = arith.constant 4 : index
    %64 = memref.load %arg2[%c1_36, %c4_37] : memref<3x8xf32, #tpu.memory_space<smem>>
    %65 = vector.broadcast %64 : f32 to vector<16x128xf32>
    %66 = arith.mulf %65, %59 : vector<16x128xf32>
    %67 = arith.addf %52, %66 : vector<16x128xf32>
    %c2_38 = arith.constant 2 : index
    %c4_39 = arith.constant 4 : index
    %68 = memref.load %arg2[%c2_38, %c4_39] : memref<3x8xf32, #tpu.memory_space<smem>>
    %69 = vector.broadcast %68 : f32 to vector<16x128xf32>
    %70 = arith.mulf %69, %59 : vector<16x128xf32>
    %71 = arith.addf %56, %70 : vector<16x128xf32>
    %c5 = arith.constant 5 : index
    %c0_40 = arith.constant 0 : index
    %c0_41 = arith.constant 0 : index
    %72 = vector.load %arg4[%c5, %c0_40, %c0_41] : memref<8x16x128xbf16, #tpu.memory_space<vmem>>, vector<1x16x128xbf16>
    %73 = vector.shape_cast %72 : vector<1x16x128xbf16> to vector<16x128xbf16>
    %74 = arith.extf %73 : vector<16x128xbf16> to vector<16x128xf32>
    %c0_42 = arith.constant 0 : index
    %c5_43 = arith.constant 5 : index
    %75 = memref.load %arg2[%c0_42, %c5_43] : memref<3x8xf32, #tpu.memory_space<smem>>
    %76 = vector.broadcast %75 : f32 to vector<16x128xf32>
    %77 = arith.mulf %76, %74 : vector<16x128xf32>
    %78 = arith.addf %63, %77 : vector<16x128xf32>
    %c1_44 = arith.constant 1 : index
    %c5_45 = arith.constant 5 : index
    %79 = memref.load %arg2[%c1_44, %c5_45] : memref<3x8xf32, #tpu.memory_space<smem>>
    %80 = vector.broadcast %79 : f32 to vector<16x128xf32>
    %81 = arith.mulf %80, %74 : vector<16x128xf32>
    %82 = arith.addf %67, %81 : vector<16x128xf32>
    %c2_46 = arith.constant 2 : index
    %c5_47 = arith.constant 5 : index
    %83 = memref.load %arg2[%c2_46, %c5_47] : memref<3x8xf32, #tpu.memory_space<smem>>
    %84 = vector.broadcast %83 : f32 to vector<16x128xf32>
    %85 = arith.mulf %84, %74 : vector<16x128xf32>
    %86 = arith.addf %71, %85 : vector<16x128xf32>
    %c6 = arith.constant 6 : index
    %c0_48 = arith.constant 0 : index
    %c0_49 = arith.constant 0 : index
    %87 = vector.load %arg4[%c6, %c0_48, %c0_49] : memref<8x16x128xbf16, #tpu.memory_space<vmem>>, vector<1x16x128xbf16>
    %88 = vector.shape_cast %87 : vector<1x16x128xbf16> to vector<16x128xbf16>
    %89 = arith.extf %88 : vector<16x128xbf16> to vector<16x128xf32>
    %c0_50 = arith.constant 0 : index
    %c6_51 = arith.constant 6 : index
    %90 = memref.load %arg2[%c0_50, %c6_51] : memref<3x8xf32, #tpu.memory_space<smem>>
    %91 = vector.broadcast %90 : f32 to vector<16x128xf32>
    %92 = arith.mulf %91, %89 : vector<16x128xf32>
    %93 = arith.addf %78, %92 : vector<16x128xf32>
    %c1_52 = arith.constant 1 : index
    %c6_53 = arith.constant 6 : index
    %94 = memref.load %arg2[%c1_52, %c6_53] : memref<3x8xf32, #tpu.memory_space<smem>>
    %95 = vector.broadcast %94 : f32 to vector<16x128xf32>
    %96 = arith.mulf %95, %89 : vector<16x128xf32>
    %97 = arith.addf %82, %96 : vector<16x128xf32>
    %c2_54 = arith.constant 2 : index
    %c6_55 = arith.constant 6 : index
    %98 = memref.load %arg2[%c2_54, %c6_55] : memref<3x8xf32, #tpu.memory_space<smem>>
    %99 = vector.broadcast %98 : f32 to vector<16x128xf32>
    %100 = arith.mulf %99, %89 : vector<16x128xf32>
    %101 = arith.addf %86, %100 : vector<16x128xf32>
    %c7 = arith.constant 7 : index
    %c0_56 = arith.constant 0 : index
    %c0_57 = arith.constant 0 : index
    %102 = vector.load %arg4[%c7, %c0_56, %c0_57] : memref<8x16x128xbf16, #tpu.memory_space<vmem>>, vector<1x16x128xbf16>
    %103 = vector.shape_cast %102 : vector<1x16x128xbf16> to vector<16x128xbf16>
    %104 = arith.extf %103 : vector<16x128xbf16> to vector<16x128xf32>
    %c0_58 = arith.constant 0 : index
    %c7_59 = arith.constant 7 : index
    %105 = memref.load %arg2[%c0_58, %c7_59] : memref<3x8xf32, #tpu.memory_space<smem>>
    %106 = vector.broadcast %105 : f32 to vector<16x128xf32>
    %107 = arith.mulf %106, %104 : vector<16x128xf32>
    %108 = arith.addf %93, %107 : vector<16x128xf32>
    %c1_60 = arith.constant 1 : index
    %c7_61 = arith.constant 7 : index
    %109 = memref.load %arg2[%c1_60, %c7_61] : memref<3x8xf32, #tpu.memory_space<smem>>
    %110 = vector.broadcast %109 : f32 to vector<16x128xf32>
    %111 = arith.mulf %110, %104 : vector<16x128xf32>
    %112 = arith.addf %97, %111 : vector<16x128xf32>
    %c2_62 = arith.constant 2 : index
    %c7_63 = arith.constant 7 : index
    %113 = memref.load %arg2[%c2_62, %c7_63] : memref<3x8xf32, #tpu.memory_space<smem>>
    %114 = vector.broadcast %113 : f32 to vector<16x128xf32>
    %115 = arith.mulf %114, %104 : vector<16x128xf32>
    %116 = arith.addf %101, %115 : vector<16x128xf32>
    %c0_64 = arith.constant 0 : index
    %c0_65 = arith.constant 0 : index
    %c0_66 = arith.constant 0 : index
    %117 = vector.load %arg11[%c0_64, %c0_65, %c0_66] : memref<3x16x128xf32, #tpu.memory_space<vmem>>, vector<1x16x128xf32>
    %118 = vector.shape_cast %117 : vector<1x16x128xf32> to vector<16x128xf32>
    %119 = vector.shape_cast %108 : vector<16x128xf32> to vector<1x16x128xf32>
    tpu.vector_store %arg11[%c0_64, %c0_65, %c0_66], %119 {strides = array<i32>} : memref<3x16x128xf32, #tpu.memory_space<vmem>>, vector<1x16x128xf32>,
    %c1_67 = arith.constant 1 : index
    %c0_68 = arith.constant 0 : index
    %c0_69 = arith.constant 0 : index
    %120 = vector.load %arg11[%c1_67, %c0_68, %c0_69] : memref<3x16x128xf32, #tpu.memory_space<vmem>>, vector<1x16x128xf32>
    %121 = vector.shape_cast %120 : vector<1x16x128xf32> to vector<16x128xf32>
    %122 = vector.shape_cast %112 : vector<16x128xf32> to vector<1x16x128xf32>
    tpu.vector_store %arg11[%c1_67, %c0_68, %c0_69], %122 {strides = array<i32>} : memref<3x16x128xf32, #tpu.memory_space<vmem>>, vector<1x16x128xf32>,
    %c2_70 = arith.constant 2 : index
    %c0_71 = arith.constant 0 : index
    %c0_72 = arith.constant 0 : index
    %123 = vector.load %arg11[%c2_70, %c0_71, %c0_72] : memref<3x16x128xf32, #tpu.memory_space<vmem>>, vector<1x16x128xf32>
    %124 = vector.shape_cast %123 : vector<1x16x128xf32> to vector<16x128xf32>
    %125 = vector.shape_cast %116 : vector<16x128xf32> to vector<1x16x128xf32>
    tpu.vector_store %arg11[%c2_70, %c0_71, %c0_72], %125 {strides = array<i32>} : memref<3x16x128xf32, #tpu.memory_space<vmem>>, vector<1x16x128xf32>,
    %c0_73 = arith.constant 0 : index
    %c0_74 = arith.constant 0 : index
    %126 = vector.load %arg3[%c0_73, %c0_74] : memref<16x16xf32, #tpu.memory_space<vmem>>, vector<16x16xf32>
    %c0_75 = arith.constant 0 : index
    %c0_76 = arith.constant 0 : index
    %127 = vector.load %arg5[%c0_75, %c0_76] : memref<16x128xf32, #tpu.memory_space<vmem>>, vector<16x128xf32>
    %cst = arith.constant dense<0.000000e+00> : vector<16x128xf32>
    %128 = tpu.matmul %126, %127, %cst {dimension_numbers = #tpu.dot_dimension_numbers<[1], [0], [0], [1], [0, 0, 1, 1], [], []>} : vector<16x16xf32>, vector<16x128xf32>, vector<16x128xf32> -> vector<16x128xf32>
    %c0_77 = arith.constant 0 : index
    %c0_78 = arith.constant 0 : index
    %129 = vector.load %arg6[%c0_77, %c0_78] : memref<1x128xf32, #tpu.memory_space<vmem>>, vector<1x128xf32>
    %130 = vector.broadcast %129 : vector<1x128xf32> to vector<16x128xf32>
    %131 = arith.addf %128, %130 : vector<16x128xf32>
    %132 = arith.negf %131 : vector<16x128xf32>
    %133 = math.exp %132 : vector<16x128xf32>
    %cst_79 = arith.constant 1.000000e+00 : f32
    %134 = vector.broadcast %cst_79 : f32 to vector<16x128xf32>
    %135 = arith.addf %134, %133 : vector<16x128xf32>
    %136 = arith.divf %134, %135 : vector<16x128xf32>
    %137 = arith.truncf %136 : vector<16x128xf32> to vector<16x128xbf16>
    %c0_80 = arith.constant 0 : index
    %c0_81 = arith.constant 0 : index
    %138 = vector.load %arg7[%c0_80, %c0_81] : memref<128x128xbf16, #tpu.memory_space<vmem>>, vector<128x128xbf16>
    %cst_82 = arith.constant dense<0.000000e+00> : vector<16x128xf32>
    %139 = tpu.matmul %137, %138, %cst_82 {dimension_numbers = #tpu.dot_dimension_numbers<[1], [0], [0], [1], [0, 0, 1, 1], [], []>} : vector<16x128xbf16>, vector<128x128xbf16>, vector<16x128xf32> -> vector<16x128xf32>
    %c0_83 = arith.constant 0 : index
    %c0_84 = arith.constant 0 : index
    %c0_85 = arith.constant 0 : index
    %140 = vector.load %arg11[%c0_83, %c0_84, %c0_85] : memref<3x16x128xf32, #tpu.memory_space<vmem>>, vector<1x16x128xf32>
    %141 = vector.shape_cast %140 : vector<1x16x128xf32> to vector<16x128xf32>
    %142 = arith.mulf %139, %141 : vector<16x128xf32>
    %c1_86 = arith.constant 1 : index
    %c0_87 = arith.constant 0 : index
    %c0_88 = arith.constant 0 : index
    %143 = vector.load %arg11[%c1_86, %c0_87, %c0_88] : memref<3x16x128xf32, #tpu.memory_space<vmem>>, vector<1x16x128xf32>
    %144 = vector.shape_cast %143 : vector<1x16x128xf32> to vector<16x128xf32>
    %145 = arith.mulf %139, %144 : vector<16x128xf32>
    %c2_89 = arith.constant 2 : index
    %c0_90 = arith.constant 0 : index
    %c0_91 = arith.constant 0 : index
    %146 = vector.load %arg11[%c2_89, %c0_90, %c0_91] : memref<3x16x128xf32, #tpu.memory_space<vmem>>, vector<1x16x128xf32>
    %147 = vector.shape_cast %146 : vector<1x16x128xf32> to vector<16x128xf32>
    %148 = arith.mulf %139, %147 : vector<16x128xf32>
    %c1_i32 = arith.constant 1 : i32
    %149 = tpu.dynamic_rotate %142 by %c1_i32 dim 1 : vector<16x128xf32>, i32 -> vector<16x128xf32>
    %c127_i32 = arith.constant 127 : i32
    %150 = tpu.dynamic_rotate %148 by %c127_i32 dim 1 : vector<16x128xf32>, i32 -> vector<16x128xf32>
    %151 = arith.addf %149, %145 : vector<16x128xf32>
    %152 = arith.addf %151, %150 : vector<16x128xf32>
    %153 = arith.truncf %152 : vector<16x128xf32> to vector<16x128xbf16>
    %c0_92 = arith.constant 0 : index
    %c0_93 = arith.constant 0 : index
    %154 = vector.load %arg8[%c0_92, %c0_93] : memref<128x128xbf16, #tpu.memory_space<vmem>>, vector<128x128xbf16>
    %cst_94 = arith.constant dense<0.000000e+00> : vector<16x128xf32>
    %155 = tpu.matmul %153, %154, %cst_94 {dimension_numbers = #tpu.dot_dimension_numbers<[1], [0], [0], [1], [0, 0, 1, 1], [], []>} : vector<16x128xbf16>, vector<128x128xbf16>, vector<16x128xf32> -> vector<16x128xf32>
    %c0_95 = arith.constant 0 : index
    %c0_96 = arith.constant 0 : index
    %156 = vector.load %arg9[%c0_95, %c0_96] : memref<1x128xf32, #tpu.memory_space<vmem>>, vector<1x128xf32>
    %157 = vector.broadcast %156 : vector<1x128xf32> to vector<16x128xf32>
    %158 = arith.addf %155, %157 : vector<16x128xf32>
    %c0_97 = arith.constant 0 : index
    %c0_98 = arith.constant 0 : index
    %159 = vector.load %arg10[%c0_97, %c0_98] : memref<16x128xf32, #tpu.memory_space<vmem>>, vector<16x128xf32>
    tpu.vector_store %arg10[%c0_97, %c0_98], %158 {strides = array<i32>} : memref<16x128xf32, #tpu.memory_space<vmem>>, vector<16x128xf32>,
    return
  }
  func.func @transform_0(%arg0: i32, %arg1: i32) -> (i32, i32) {
    %c0_i32 = arith.constant 0 : i32
    %c0_i32_0 = arith.constant 0 : i32
    %c0_i32_1 = arith.constant 0 : i32
    return %c0_i32, %c0_i32_0 : i32, i32
  }
  func.func @transform_1(%arg0: i32, %arg1: i32) -> (i32, i32) {
    %c0_i32 = arith.constant 0 : i32
    %c0_i32_0 = arith.constant 0 : i32
    return %arg0, %c0_i32 : i32, i32
  }
  func.func @transform_2(%arg0: i32, %arg1: i32) -> (i32, i32, i32) {
    %c0_i32 = arith.constant 0 : i32
    %c0_i32_0 = arith.constant 0 : i32
    return %arg1, %arg0, %c0_i32 : i32, i32, i32
  }
  func.func @transform_3(%arg0: i32, %arg1: i32) -> (i32, i32) {
    %c0_i32 = arith.constant 0 : i32
    %c0_i32_0 = arith.constant 0 : i32
    %c0_i32_1 = arith.constant 0 : i32
    return %c0_i32, %c0_i32_0 : i32, i32
  }
  func.func @transform_4(%arg0: i32, %arg1: i32) -> (i32, i32) {
    %c0_i32 = arith.constant 0 : i32
    %c0_i32_0 = arith.constant 0 : i32
    %c0_i32_1 = arith.constant 0 : i32
    return %c0_i32, %c0_i32_0 : i32, i32
  }
  func.func @transform_5(%arg0: i32, %arg1: i32) -> (i32, i32) {
    %c0_i32 = arith.constant 0 : i32
    %c0_i32_0 = arith.constant 0 : i32
    %c0_i32_1 = arith.constant 0 : i32
    return %c0_i32, %c0_i32_0 : i32, i32
  }
  func.func @transform_6(%arg0: i32, %arg1: i32) -> (i32, i32) {
    %c0_i32 = arith.constant 0 : i32
    %c0_i32_0 = arith.constant 0 : i32
    %c0_i32_1 = arith.constant 0 : i32
    return %c0_i32, %c0_i32_0 : i32, i32
  }
  func.func @transform_7(%arg0: i32, %arg1: i32) -> (i32, i32) {
    %c0_i32 = arith.constant 0 : i32
    %c0_i32_0 = arith.constant 0 : i32
    %c0_i32_1 = arith.constant 0 : i32
    return %c0_i32, %c0_i32_0 : i32, i32
  }
  func.func @transform_8(%arg0: i32, %arg1: i32) -> (i32, i32) {
    %c0_i32 = arith.constant 0 : i32
    %c0_i32_0 = arith.constant 0 : i32
    return %arg0, %c0_i32 : i32, i32
  }
}

</mosaic_0001>

<llo_original>
// kernel: bicep_forward.1
$region0: #{bicep_forward.1}
  #allocation0 [shape = 'u32[]', space=smem, size = 0x4, offset = 0x4, fixed_abs, tag = 'smem constant byte address 0x4 - core index']
  #allocation1 [shape = 'u32[72,128]{1,0:T(1,128)}', space=vmem, size = 0x9000, scoped, tag = 'internal scratch']
  #allocation2 [shape = 'f32[3,16,128]{2,1,0:T(8,128)}', space=vmem, size = 0x6000, scoped, tag = 'scratch operand']
  %s0 = inlined_call_operand.vmem [shape: f32[3,8], index: 0, kind: input, shape index: {}]
  %s1 = inlined_call_operand.vmem [shape: f32[16,16], index: 1, kind: input, shape index: {}]
  %s2 = inlined_call_operand.vmem [shape: bf16[8,16,128], index: 2, kind: input, shape index: {}]
  %s3 = inlined_call_operand.vmem [shape: f32[16,128], index: 3, kind: input, shape index: {}]
  %s4 = inlined_call_operand.vmem [shape: f32[1,128], index: 4, kind: input, shape index: {}]
  %s5 = inlined_call_operand.vmem [shape: bf16[128,128], index: 5, kind: input, shape index: {}]
  %s6 = inlined_call_operand.vmem [shape: bf16[128,128], index: 6, kind: input, shape index: {}]
  %s7 = inlined_call_operand.vmem [shape: f32[1,128], index: 7, kind: input, shape index: {}]
  %s8 = inlined_call_operand.vmem [shape: f32[16,128], index: 8, kind: output, shape index: {}]
  %s9 = sld [smem:[#allocation0]]
  $region46: #{bicep_forward.1} parent=0
    _
  %s11 = ssub.s32 1, %s9
  %s12 = scalar_select 0, %s11, %s9
  $region1: #{bicep_forward.1} parent=0
    #allocation3 [shape = 'u8[2048]{0}', space=smem, size = 0x800, scoped, tag = 'input window, operand 0, single buffered']
    #allocation4 [shape = 's32[1]{0}', space=sflag, size = 0x4, scoped, tag = 'scoped memory for bicep_forward.1']
    %13 = vsyncpa [#allocation4], 0
    // Predicated region
    $region2: #{bicep_forward.1} parent=1 // pred_check
      _
    $region3: #{bicep_forward.1} parent=1 // pred_check_branch
      %15 = sbr.rel (0) target = $region5
    $region4: #{bicep_forward.1} parent=1 // pred_region
      %17 = vsyncadd [#allocation4], 0
      %s19 = sshll.u32 %s0, 4
      %s20 = int_to_ptr.vmem [resolvable:$true] %s19
      %22 = dma.vmem_to_smem %s20, 64, [#allocation3], [#allocation4]
    $region5: #{bicep_forward.1} parent=1 // pred_fallthru
      _
    // Predicated region
    $region6: #{bicep_forward.1} parent=1 // pred_check
      _
    $region7: #{bicep_forward.1} parent=1 // pred_check_branch
      %24 = sbr.rel (0) target = $region9
    $region8: #{bicep_forward.1} parent=1 // pred_region
      _
    $region9: #{bicep_forward.1} parent=1 // pred_fallthru
      _
    // Predicated region
    $region10: #{bicep_forward.1} parent=1 // pred_check
      _
    $region11: #{bicep_forward.1} parent=1 // pred_check_branch
      %26 = sbr.rel (0) target = $region13
    $region12: #{bicep_forward.1} parent=1 // pred_region
      _
    $region13: #{bicep_forward.1} parent=1 // pred_fallthru
      _
    // Predicated region
    $region14: #{bicep_forward.1} parent=1 // pred_check
      _
    $region15: #{bicep_forward.1} parent=1 // pred_check_branch
      %28 = sbr.rel (0) target = $region17
    $region16: #{bicep_forward.1} parent=1 // pred_region
      _
    $region17: #{bicep_forward.1} parent=1 // pred_fallthru
      _
    // Predicated region
    $region18: #{bicep_forward.1} parent=1 // pred_check
      _
    $region19: #{bicep_forward.1} parent=1 // pred_check_branch
      %30 = sbr.rel (0) target = $region21
    $region20: #{bicep_forward.1} parent=1 // pred_region
      _
    $region21: #{bicep_forward.1} parent=1 // pred_fallthru
      _
    // Predicated region
    $region22: #{bicep_forward.1} parent=1 // pred_check
      _
    $region23: #{bicep_forward.1} parent=1 // pred_check_branch
      %32 = sbr.rel (0) target = $region25
    $region24: #{bicep_forward.1} parent=1 // pred_region
      _
    $region25: #{bicep_forward.1} parent=1 // pred_fallthru
      _
    // Predicated region
    $region26: #{bicep_forward.1} parent=1 // pred_check
      _
    $region27: #{bicep_forward.1} parent=1 // pred_check_branch
      %34 = sbr.rel (0) target = $region29
    $region28: #{bicep_forward.1} parent=1 // pred_region
      _
    $region29: #{bicep_forward.1} parent=1 // pred_fallthru
      _
    // Predicated region
    $region30: #{bicep_forward.1} parent=1 // pred_check
      _
    $region31: #{bicep_forward.1} parent=1 // pred_check_branch
      %36 = sbr.rel (0) target = $region33
    $region32: #{bicep_forward.1} parent=1 // pred_region
      _
    $region33: #{bicep_forward.1} parent=1 // pred_fallthru
      _
    // Predicated region
    $region34: #{bicep_forward.1} parent=1 // pred_check
      _
    $region35: #{bicep_forward.1} parent=1 // pred_check_branch
      %38 = sbr.rel (0) target = $region37
    $region36: #{bicep_forward.1} parent=1 // pred_region
      %40 = dma.done [#allocation4], 64
    $region37: #{bicep_forward.1} parent=1 // pred_fallthru
      _
    %41 = sfence
    %v42 = vld [vmem:[%s2] sm:$0xf]
    %v43 = vld [vmem:[%s2 + $0x4] sm:$0xf]
    %v44 = vunpack.c.l.bf16 %v42
    %v45 = vunpack.c.l.bf16 %v43
    %s46 = sld [smem:[#allocation3]]
    %v47 = vstv %s46
    %v48 = vmul.f32 %v47, %v44
    %v49 = vmul.f32 %v47, %v45
    %s50 = sld [smem:[#allocation3 + $0x80]]
    %v51 = vstv %s50
    %v52 = vmul.f32 %v51, %v44
    %v53 = vmul.f32 %v51, %v45
    %s54 = sld [smem:[#allocation3 + $0x100]]
    %v55 = vstv %s54
    %v56 = vmul.f32 %v55, %v44
    %v57 = vmul.f32 %v55, %v45
    %s58 = scalar_lea.vmem %s2, 8
    %v59 = vld [vmem:[%s58] sm:$0xf]
    %v60 = vld [vmem:[%s58 + $0x4] sm:$0xf]
    %v61 = vunpack.c.l.bf16 %v59
    %v62 = vunpack.c.l.bf16 %v60
    %s63 = sld [smem:[#allocation3 + $0x1]]
    %v64 = vstv %s63
    %v65 = vmul.f32 %v64, %v61
    %v66 = vmul.f32 %v64, %v62
    %v67 = vadd.f32 %v48, %v65
    %v68 = vadd.f32 %v49, %v66
    %s69 = sld [smem:[#allocation3 + $0x81]]
    %v70 = vstv %s69
    %v71 = vmul.f32 %v70, %v61
    %v72 = vmul.f32 %v70, %v62
    %v73 = vadd.f32 %v52, %v71
    %v74 = vadd.f32 %v53, %v72
    %s75 = sld [smem:[#allocation3 + $0x101]]
    %v76 = vstv %s75
    %v77 = vmul.f32 %v76, %v61
    %v78 = vmul.f32 %v76, %v62
    %v79 = vadd.f32 %v56, %v77
    %v80 = vadd.f32 %v57, %v78
    %s81 = scalar_lea.vmem %s2, 16
    %v82 = vld [vmem:[%s81] sm:$0xf]
    %v83 = vld [vmem:[%s81 + $0x4] sm:$0xf]
    %v84 = vunpack.c.l.bf16 %v82
    %v85 = vunpack.c.l.bf16 %v83
    %s86 = sld [smem:[#allocation3 + $0x2]]
    %v87 = vstv %s86
    %v88 = vmul.f32 %v87, %v84
    %v89 = vmul.f32 %v87, %v85
    %v90 = vadd.f32 %v67, %v88
    %v91 = vadd.f32 %v68, %v89
    %s92 = sld [smem:[#allocation3 + $0x82]]
    %v93 = vstv %s92
    %v94 = vmul.f32 %v93, %v84
    %v95 = vmul.f32 %v93, %v85
    %v96 = vadd.f32 %v73, %v94
    %v97 = vadd.f32 %v74, %v95
    %s98 = sld [smem:[#allocation3 + $0x102]]
    %v99 = vstv %s98
    %v100 = vmul.f32 %v99, %v84
    %v101 = vmul.f32 %v99, %v85
    %v102 = vadd.f32 %v79, %v100
    %v103 = vadd.f32 %v80, %v101
    %s104 = scalar_lea.vmem %s2, 24
    %v105 = vld [vmem:[%s104] sm:$0xf]
    %v106 = vld [vmem:[%s104 + $0x4] sm:$0xf]
    %v107 = vunpack.c.l.bf16 %v105
    %v108 = vunpack.c.l.bf16 %v106
    %s109 = sld [smem:[#allocation3 + $0x3]]
    %v110 = vstv %s109
    %v111 = vmul.f32 %v110, %v107
    %v112 = vmul.f32 %v110, %v108
    %v113 = vadd.f32 %v90, %v111
    %v114 = vadd.f32 %v91, %v112
    %s115 = sld [smem:[#allocation3 + $0x83]]
    %v116 = vstv %s115
    %v117 = vmul.f32 %v116, %v107
    %v118 = vmul.f32 %v116, %v108
    %v119 = vadd.f32 %v96, %v117
    %v120 = vadd.f32 %v97, %v118
    %s121 = sld [smem:[#allocation3 + $0x103]]
    %v122 = vstv %s121
    %v123 = vmul.f32 %v122, %v107
    %v124 = vmul.f32 %v122, %v108
    %v125 = vadd.f32 %v102, %v123
    %v126 = vadd.f32 %v103, %v124
    %s127 = scalar_lea.vmem %s2, 32
    %v128 = vld [vmem:[%s127] sm:$0xf]
    %v129 = vld [vmem:[%s127 + $0x4] sm:$0xf]
    %v130 = vunpack.c.l.bf16 %v128
    %v131 = vunpack.c.l.bf16 %v129
    %s132 = sld [smem:[#allocation3 + $0x4]]
    %v133 = vstv %s132
    %v134 = vmul.f32 %v133, %v130
    %v135 = vmul.f32 %v133, %v131
    %v136 = vadd.f32 %v113, %v134
    %v137 = vadd.f32 %v114, %v135
    %s138 = sld [smem:[#allocation3 + $0x84]]
    %v139 = vstv %s138
    %v140 = vmul.f32 %v139, %v130
    %v141 = vmul.f32 %v139, %v131
    %v142 = vadd.f32 %v119, %v140
    %v143 = vadd.f32 %v120, %v141
    %s144 = sld [smem:[#allocation3 + $0x104]]
    %v145 = vstv %s144
    %v146 = vmul.f32 %v145, %v130
    %v147 = vmul.f32 %v145, %v131
    %v148 = vadd.f32 %v125, %v146
    %v149 = vadd.f32 %v126, %v147
    %s150 = scalar_lea.vmem %s2, 40
    %v151 = vld [vmem:[%s150] sm:$0xf]
    %v152 = vld [vmem:[%s150 + $0x4] sm:$0xf]
    %v153 = vunpack.c.l.bf16 %v151
    %v154 = vunpack.c.l.bf16 %v152
    %s155 = sld [smem:[#allocation3 + $0x5]]
    %v156 = vstv %s155
    %v157 = vmul.f32 %v156, %v153
    %v158 = vmul.f32 %v156, %v154
    %v159 = vadd.f32 %v136, %v157
    %v160 = vadd.f32 %v137, %v158
    %s161 = sld [smem:[#allocation3 + $0x85]]
    %v162 = vstv %s161
    %v163 = vmul.f32 %v162, %v153
    %v164 = vmul.f32 %v162, %v154
    %v165 = vadd.f32 %v142, %v163
    %v166 = vadd.f32 %v143, %v164
    %s167 = sld [smem:[#allocation3 + $0x105]]
    %v168 = vstv %s167
    %v169 = vmul.f32 %v168, %v153
    %v170 = vmul.f32 %v168, %v154
    %v171 = vadd.f32 %v148, %v169
    %v172 = vadd.f32 %v149, %v170
    %s173 = scalar_lea.vmem %s2, 48
    %v174 = vld [vmem:[%s173] sm:$0xf]
    %v175 = vld [vmem:[%s173 + $0x4] sm:$0xf]
    %v176 = vunpack.c.l.bf16 %v174
    %v177 = vunpack.c.l.bf16 %v175
    %s178 = sld [smem:[#allocation3 + $0x6]]
    %v179 = vstv %s178
    %v180 = vmul.f32 %v179, %v176
    %v181 = vmul.f32 %v179, %v177
    %v182 = vadd.f32 %v159, %v180
    %v183 = vadd.f32 %v160, %v181
    %s184 = sld [smem:[#allocation3 + $0x86]]
    %v185 = vstv %s184
    %v186 = vmul.f32 %v185, %v176
    %v187 = vmul.f32 %v185, %v177
    %v188 = vadd.f32 %v165, %v186
    %v189 = vadd.f32 %v166, %v187
    %s190 = sld [smem:[#allocation3 + $0x106]]
    %v191 = vstv %s190
    %v192 = vmul.f32 %v191, %v176
    %v193 = vmul.f32 %v191, %v177
    %v194 = vadd.f32 %v171, %v192
    %v195 = vadd.f32 %v172, %v193
    %s196 = scalar_lea.vmem %s2, 56
    %v197 = vld [vmem:[%s196] sm:$0xf]
    %v198 = vld [vmem:[%s196 + $0x4] sm:$0xf]
    %v199 = vunpack.c.l.bf16 %v197
    %v200 = vunpack.c.l.bf16 %v198
    %s201 = sld [smem:[#allocation3 + $0x7]]
    %v202 = vstv %s201
    %v203 = vmul.f32 %v202, %v199
    %v204 = vmul.f32 %v202, %v200
    %v205 = vadd.f32 %v182, %v203
    %v206 = vadd.f32 %v183, %v204
    %s207 = sld [smem:[#allocation3 + $0x87]]
    %v208 = vstv %s207
    %v209 = vmul.f32 %v208, %v199
    %v210 = vmul.f32 %v208, %v200
    %v211 = vadd.f32 %v188, %v209
    %v212 = vadd.f32 %v189, %v210
    %s213 = sld [smem:[#allocation3 + $0x107]]
    %v214 = vstv %s213
    %v215 = vmul.f32 %v214, %v199
    %v216 = vmul.f32 %v214, %v200
    %v217 = vadd.f32 %v194, %v215
    %v218 = vadd.f32 %v195, %v216
    %219 = vst [vmem:[#allocation2] sm:$0xff] %v205
    %220 = vst [vmem:[#allocation2 + $0x8] sm:$0xff] %v206
    %s221 = scalar_lea.vmem [#allocation2], 16
    %222 = vst [vmem:[%s221] sm:$0xff] %v211
    %223 = vst [vmem:[%s221 + $0x8] sm:$0xff] %v212
    %s224 = scalar_lea.vmem [#allocation2], 32
    %225 = vst [vmem:[%s224] sm:$0xff] %v217
    %226 = vst [vmem:[%s224 + $0x8] sm:$0xff] %v218
    %v227 = vld [vmem:[%s1] sm:$0xff]
    %v228 = vld [vmem:[%s1 + $0x8] sm:$0xff]
    %v229 = vld [vmem:[%s3] sm:$0xff]
    %v230 = vld [vmem:[%s3 + $0x8] sm:$0xff]
    %v231 = vld [vmem:[%s4] sm:$0x1]
    %v233 = vperm.slane %v231, 0
    %vm235 = vcmask 130048
    %v237 = vsel %vm235, %v227, 0
    %v240 = vsel %vm235, %v228, 0
    %242 = vmatpush.msra.mxu0 0.0
    %243 = vmatpush.msra.mxu0 0.0
    %244 = vmatpush.msra.mxu0 0.0
    %245 = vmatpush.msra.mxu0 0.0
    %246 = vmatpush.msra.mxu0 0.0
    %247 = vmatpush.msra.mxu0 0.0
    %248 = vmatpush.msra.mxu0 0.0
    %249 = vmatpush.msra.mxu0 0.0
    %250 = vmatpush.msra.mxu0 0.0
    %251 = vmatpush.msra.mxu0 0.0
    %252 = vmatpush.msra.mxu0 0.0
    %253 = vmatpush.msra.mxu0 0.0
    %254 = vmatpush.msra.mxu0 0.0
    %255 = vmatpush.msra.mxu0 0.0
    %256 = vmatpush.msra.mxu0 %v230
    %257 = vmatpush.msra.mxu0 %v229
    %258 = vmatmul.f32.gmra.mxu0 %v237
    %v259 = vpop.f32.mrf.mxu0
    %v260 = vadd.f32 %v233, %v259
    %261 = vmatmul.f32.gmra.mxu0 %v240
    %v262 = vpop.f32.mrf.mxu0
    %v263 = vadd.f32 %v233, %v262
    %264 = vdwg.mxu0
    %v265 = vxor.u32 %v260, 2147483648
    %v266 = vxor.u32 %v263, 2147483648
    %v267 = vmul.f32 %v265, 1.442695
    %v268 = vpow.pop %v267
    %v269 = vmul.f32 %v266, 1.442695
    %v270 = vpow.pop %v269
    %v271 = vadd.f32 %v268, 1.0
    %v272 = vadd.f32 %v270, 1.0
    %v273 = vrcp.pop %v271
    %v274 = vmul.f32 %v271, %v273
    %v275 = vsub.f32 1.0, %v274
    %v276 = vmul.f32 %v273, %v275
    %v277 = vadd.f32 %v273, %v276
    %vm278 = vweird.f32 %v271
    %vm279 = vweird.f32 %v273
    %vm280 = vmor %vm278, %vm279
    %v281 = vsel %vm280, %v273, %v277
    %v282 = vand.u32 2147483647, %v271
    %vm283 = vcmp.eq.f32.partialorder %v282, 8.507059e+37
    %v284 = vand.u32 %v271, 2147483648
    %v285 = vor.u32 1.1754944e-38, %v284
    %v286 = vsel %vm283, %v285, %v281
    %v287 = vmul.f32 1.0, %v286
    %v288 = vrcp.pop %v272
    %v289 = vmul.f32 %v272, %v288
    %v290 = vsub.f32 1.0, %v289
    %v291 = vmul.f32 %v288, %v290
    %v292 = vadd.f32 %v288, %v291
    %vm293 = vweird.f32 %v272
    %vm294 = vweird.f32 %v288
    %vm295 = vmor %vm293, %vm294
    %v296 = vsel %vm295, %v288, %v292
    %v297 = vand.u32 2147483647, %v272
    %vm298 = vcmp.eq.f32.partialorder %v297, 8.507059e+37
    %v299 = vand.u32 %v272, 2147483648
    %v300 = vor.u32 1.1754944e-38, %v299
    %v301 = vsel %vm298, %v300, %v296
    %v302 = vmul.f32 1.0, %v301
    %v303 = vpack.c.bf16 %v302, %v287
    %v304 = vld [vmem:[%s5] sm:$0xf]
    %v305 = vld [vmem:[%s5 + $0x4] sm:$0xf]
    %v306 = vld [vmem:[%s5 + $0x8] sm:$0xf]
    %v307 = vld [vmem:[%s5 + $0xc] sm:$0xf]
    %v308 = vld [vmem:[%s5 + $0x10] sm:$0xf]
    %v309 = vld [vmem:[%s5 + $0x14] sm:$0xf]
    %v310 = vld [vmem:[%s5 + $0x18] sm:$0xf]
    %v311 = vld [vmem:[%s5 + $0x1c] sm:$0xf]
    %v312 = vld [vmem:[%s5 + $0x20] sm:$0xf]
    %v313 = vld [vmem:[%s5 + $0x24] sm:$0xf]
    %v314 = vld [vmem:[%s5 + $0x28] sm:$0xf]
    %v315 = vld [vmem:[%s5 + $0x2c] sm:$0xf]
    %v316 = vld [vmem:[%s5 + $0x30] sm:$0xf]
    %v317 = vld [vmem:[%s5 + $0x34] sm:$0xf]
    %v318 = vld [vmem:[%s5 + $0x38] sm:$0xf]
    %v319 = vld [vmem:[%s5 + $0x3c] sm:$0xf]
    %v336 = vunpack.c.l.b16 %v304
    %v337 = vunpack.c.l.b16 %v305
    %v338 = vunpack.c.l.b16 %v306
    %v339 = vunpack.c.l.b16 %v307
    %v340 = vunpack.c.l.b16 %v308
    %v341 = vunpack.c.l.b16 %v309
    %v342 = vunpack.c.l.b16 %v310
    %v343 = vunpack.c.l.b16 %v311
    %v344 = vunpack.c.l.b16 %v312
    %v345 = vunpack.c.l.b16 %v313
    %v346 = vunpack.c.l.b16 %v314
    %v347 = vunpack.c.l.b16 %v315
    %v348 = vunpack.c.l.b16 %v316
    %v349 = vunpack.c.l.b16 %v317
    %v350 = vunpack.c.l.b16 %v318
    %v351 = vunpack.c.l.b16 %v319
    %v352 = vpack.c.b16 %v337, %v336
    %v353 = vpack.c.b16 %v339, %v338
    %v354 = vpack.c.b16 %v341, %v340
    %v355 = vpack.c.b16 %v343, %v342
    %v356 = vpack.c.b16 %v345, %v344
    %v357 = vpack.c.b16 %v347, %v346
    %v358 = vpack.c.b16 %v349, %v348
    %v359 = vpack.c.b16 %v351, %v350
    %368 = vmatpush.bf16.msra.mxu0 %v359
    %369 = vmatpush.bf16.msra.mxu0 %v358
    %370 = vmatpush.bf16.msra.mxu0 %v357
    %371 = vmatpush.bf16.msra.mxu0 %v356
    %372 = vmatpush.bf16.msra.mxu0 %v355
    %373 = vmatpush.bf16.msra.mxu0 %v354
    %374 = vmatpush.bf16.msra.mxu0 %v353
    %375 = vmatpush.bf16.msra.mxu0 %v352
    %376 = vmatmul.bf16.gmra.mxu0 %v303
    %v377 = vpop.f32.mrf.mxu0
    %v378 = vadd.f32 0.0, %v377
    %v379 = vpop.f32.mrf.mxu0
    %v380 = vadd.f32 0.0, %v379
    %381 = vdwg.mxu0
    %v382 = vld [vmem:[#allocation2] sm:$0xff]
    %v383 = vld [vmem:[#allocation2 + $0x8] sm:$0xff]
    %v384 = vmul.f32 %v378, %v382
    %v385 = vmul.f32 %v380, %v383
    %v386 = vld [vmem:[%s221] sm:$0xff]
    %v387 = vld [vmem:[%s221 + $0x8] sm:$0xff]
    %v388 = vmul.f32 %v378, %v386
    %v389 = vmul.f32 %v380, %v387
    %v390 = vld [vmem:[%s224] sm:$0xff]
    %v391 = vld [vmem:[%s224 + $0x8] sm:$0xff]
    %v392 = vmul.f32 %v378, %v390
    %v393 = vmul.f32 %v380, %v391
    %394 = vrot.lane.b32.xlu0 %v384, 1
    %v395 = vpop.permute.xlu0 %394
    %396 = vrot.lane.b32.xlu0 %v385, 1
    %v397 = vpop.permute.xlu0 %396
    %398 = vrot.lane.b32.xlu0 %v392, 127
    %v399 = vpop.permute.xlu0 %398
    %400 = vrot.lane.b32.xlu0 %v393, 127
    %v401 = vpop.permute.xlu0 %400
    %v402 = vadd.f32 %v395, %v388
    %v403 = vadd.f32 %v397, %v389
    %v404 = vadd.f32 %v402, %v399
    %v405 = vadd.f32 %v403, %v401
    %v406 = vpack.c.bf16 %v405, %v404
    %v407 = vld [vmem:[%s6] sm:$0xf]
    %v408 = vld [vmem:[%s6 + $0x4] sm:$0xf]
    %v409 = vld [vmem:[%s6 + $0x8] sm:$0xf]
    %v410 = vld [vmem:[%s6 + $0xc] sm:$0xf]
    %v411 = vld [vmem:[%s6 + $0x10] sm:$0xf]
    %v412 = vld [vmem:[%s6 + $0x14] sm:$0xf]
    %v413 = vld [vmem:[%s6 + $0x18] sm:$0xf]
    %v414 = vld [vmem:[%s6 + $0x1c] sm:$0xf]
    %v415 = vld [vmem:[%s6 + $0x20] sm:$0xf]
    %v416 = vld [vmem:[%s6 + $0x24] sm:$0xf]
    %v417 = vld [vmem:[%s6 + $0x28] sm:$0xf]
    %v418 = vld [vmem:[%s6 + $0x2c] sm:$0xf]
    %v419 = vld [vmem:[%s6 + $0x30] sm:$0xf]
    %v420 = vld [vmem:[%s6 + $0x34] sm:$0xf]
    %v421 = vld [vmem:[%s6 + $0x38] sm:$0xf]
    %v422 = vld [vmem:[%s6 + $0x3c] sm:$0xf]
    %v423 = vld [vmem:[%s7] sm:$0x1]
    %v425 = vperm.slane %v423, 0
    %v443 = vunpack.c.l.b16 %v407
    %v444 = vunpack.c.l.b16 %v408
    %v445 = vunpack.c.l.b16 %v409
    %v446 = vunpack.c.l.b16 %v410
    %v447 = vunpack.c.l.b16 %v411
    %v448 = vunpack.c.l.b16 %v412
    %v449 = vunpack.c.l.b16 %v413
    %v450 = vunpack.c.l.b16 %v414
    %v451 = vunpack.c.l.b16 %v415
    %v452 = vunpack.c.l.b16 %v416
    %v453 = vunpack.c.l.b16 %v417
    %v454 = vunpack.c.l.b16 %v418
    %v455 = vunpack.c.l.b16 %v419
    %v456 = vunpack.c.l.b16 %v420
    %v457 = vunpack.c.l.b16 %v421
    %v458 = vunpack.c.l.b16 %v422
    %v459 = vpack.c.b16 %v444, %v443
    %v460 = vpack.c.b16 %v446, %v445
    %v461 = vpack.c.b16 %v448, %v447
    %v462 = vpack.c.b16 %v450, %v449
    %v463 = vpack.c.b16 %v452, %v451
    %v464 = vpack.c.b16 %v454, %v453
    %v465 = vpack.c.b16 %v456, %v455
    %v466 = vpack.c.b16 %v458, %v457
    %475 = vmatpush.bf16.msra.mxu0 %v466
    %476 = vmatpush.bf16.msra.mxu0 %v465
    %477 = vmatpush.bf16.msra.mxu0 %v464
    %478 = vmatpush.bf16.msra.mxu0 %v463
    %479 = vmatpush.bf16.msra.mxu0 %v462
    %480 = vmatpush.bf16.msra.mxu0 %v461
    %481 = vmatpush.bf16.msra.mxu0 %v460
    %482 = vmatpush.bf16.msra.mxu0 %v459
    %483 = vmatmul.bf16.gmra.mxu0 %v406
    %v484 = vpop.f32.mrf.mxu0
    %v485 = vadd.f32 %v425, %v484
    %v486 = vpop.f32.mrf.mxu0
    %v487 = vadd.f32 %v425, %v486
    %488 = vdwg.mxu0
    %489 = vst [vmem:[%s8] sm:$0xff] %v485
    %490 = vst [vmem:[%s8 + $0x8] sm:$0xff] %v487
    // Predicated region
    $region38: #{bicep_forward.1} parent=1 // pred_check
      _
    $region39: #{bicep_forward.1} parent=1 // pred_check_branch
      %492 = sbr.rel (0) target = $region41
    $region40: #{bicep_forward.1} parent=1 // pred_region
      _
    $region41: #{bicep_forward.1} parent=1 // pred_fallthru
      _
    // Predicated region
    $region42: #{bicep_forward.1} parent=1 // pred_check
      _
    $region43: #{bicep_forward.1} parent=1 // pred_check_branch
      %494 = sbr.rel (0) target = $region45
    $region44: #{bicep_forward.1} parent=1 // pred_region
      _
    $region45: #{bicep_forward.1} parent=1 // pred_fallthru
      _
    %495 = vsyncpa [#allocation4], 1

</llo_original>
